<compile_context>
chip_gen: v7x
topology: tpu7x:2x2x1
jax: 0.10.0
libtpu: 0.0.40
codegen_flags: <defaults>
</compile_context>

<pallas_src>
import jax
import jax.numpy as jnp
from jax.experimental import pallas as pl
from jax.experimental.pallas import tpu as pltpu


def _softplus(x):
    # torch.nn.functional.softplus (beta=1, threshold=20). exp() may overflow
    # on the untaken branch; the select discards it (no NaN), so no extra clamp.
    return jnp.where(x > 20.0, x, jnp.log1p(jnp.exp(x)))


def critic_kernel(st_ref, ac_ref, w1_ref, b1_ref, w2_ref, b2_ref,
                  w3_ref, b3_ref, w4_ref, b4_ref, o_ref):
    # Lane-dense layout: activations are [features, batch_tile].
    cd = w2_ref.dtype          # softplus / hidden-matmul compute dtype

    st = st_ref[...]           # [2, TB]  f32
    ac = ac_ref[...]           # [1, TB]  f32
    w1 = w1_ref[...]           # [64, 3]  f32
    b1 = b1_ref[...]           # [64, 1]  f32

    # Layer 1 (in=3): K=3 matmul is MXU-degenerate -> 3 VPU broadcast-FMAs.
    # This also fuses torch.cat([state, action], -1) into the kernel.
    z = (w1[:, 0:1] * st[0:1, :]
         + w1[:, 1:2] * st[1:2, :]
         + w1[:, 2:3] * ac
         + b1)                                   # [64, TB] f32
    h = _softplus(z.astype(cd))                  # [64, TB] cd

    z = jnp.dot(w2_ref[...], h, preferred_element_type=jnp.float32) + b2_ref[...]
    h = _softplus(z.astype(cd))                  # [64, TB]

    z = jnp.dot(w3_ref[...], h, preferred_element_type=jnp.float32) + b3_ref[...]
    h = _softplus(z.astype(cd))                  # [64, TB]

    q = jnp.dot(w4_ref[...], h, preferred_element_type=jnp.float32) + b4_ref[...]
    o_ref[...] = q.astype(o_ref.dtype)           # [1, TB] lane-dense store


def _chip_defaults():
    """(compute_dtype, max_batch_tile, num_cores) for the local TPU."""
    kind = ""
    try:
        kind = jax.devices()[0].device_kind.lower()
    except Exception:
        pass
    new_gen = any(t in kind for t in ("v6", "6e", "v7", "7x"))
    two_core = any(t in kind for t in ("v7", "7x"))
    if new_gen:
        # bf16 EUP/VPU available; 32 MiB scoped VMEM default -> 8192 tile fine.
        return jnp.bfloat16, 8192, (2 if two_core else 1)
    # v5e and older (or unknown chip): f32 compute; cap the tile so the f32
    # [64, TB] intermediates stay well inside the 16 MiB scoped-VMEM window.
    return jnp.float32, 4096, 1


def _round_up(x, m):
    return ((x + m - 1) // m) * m


def _choose_batch_tile(B, max_tile, num_cores):
    """Lane-aligned batch tile; >= num_cores grid steps when B is big enough."""
    max_tile = max(128, (max_tile // 128) * 128)
    target_nb = max(num_cores, pl.cdiv(B, max_tile))
    tb = min(max_tile, _round_up(pl.cdiv(B, target_nb), 128))
    nb = pl.cdiv(B, tb)
    return tb, nb


def critic_forward(state, action, params, *, block_b=None, compute_dtype=None):
    """state: [B, 2], action: [B, 1] -> q_value: [B, 1] (f32).

    Params are in PyTorch layout: weights [out, in], biases [out].
    compute_dtype=None / block_b=None pick chip-appropriate defaults
    (bf16 + 8192 on v6e/v7x, f32 + 4096 on v5e).
    """
    w1, b1, w2, b2, w3, b3, w4, b4 = params
    B = state.shape[0]

    cd_default, bb_default, num_cores = _chip_defaults()
    cd = cd_default if compute_dtype is None else compute_dtype
    max_tile = bb_default if block_b is None else block_b

    tb, nb = _choose_batch_tile(B, max_tile, num_cores)
    Bp = nb * tb

    # Batch-on-lanes layout: activations [features, batch]. Inputs and layer-1
    # params stay f32 (layer 1 is f32 VPU FMAs); only the hidden-layer weights
    # and softplus activations use the (possibly bf16) compute dtype.
    st_t = state.astype(jnp.float32).T                  # [2, B]
    ac_t = action.astype(jnp.float32).reshape(1, B)     # [1, B] (reshape, no T)
    if Bp > B:
        pad = Bp - B
        st_t = jnp.pad(st_t, ((0, 0), (0, pad)))
        ac_t = jnp.pad(ac_t, ((0, 0), (0, pad)))

    args = (
        st_t, ac_t,
        w1.astype(jnp.float32), b1.reshape(-1, 1).astype(jnp.float32),  # [64,3],[64,1]
        w2.astype(cd),          b2.reshape(-1, 1).astype(jnp.float32),  # [64,64],[64,1]
        w3.astype(cd),          b3.reshape(-1, 1).astype(jnp.float32),  # [64,64],[64,1]
        w4.astype(cd),          b4.reshape(-1, 1).astype(jnp.float32),  # [1,64], [1,1]
    )

    # Weights/biases: full block, constant index_map -> VMEM-resident.
    const = lambda a: pl.BlockSpec(a.shape, lambda i: (0, 0))
    in_specs = [
        pl.BlockSpec((2, tb), lambda i: (0, i)),        # state^T tile
        pl.BlockSpec((1, tb), lambda i: (0, i)),        # action^T tile
    ] + [const(a) for a in args[2:]]

    param_bytes = sum(int(a.size) * a.dtype.itemsize for a in args[2:])
    io_bytes = int(st_t.size + ac_t.size) * 4 + 4 * Bp
    cost = pl.CostEstimate(
        flops=2 * B * (3 * 64 + 64 * 64 + 64 * 64 + 64),
        transcendentals=2 * 3 * 64 * B,                 # exp + log1p per hidden
        bytes_accessed=io_bytes + param_bytes,
    )

    out = pl.pallas_call(
        critic_kernel,
        out_shape=jax.ShapeDtypeStruct((1, Bp), jnp.float32),
        grid=(nb,),
        in_specs=in_specs,
        out_specs=pl.BlockSpec((1, tb), lambda i: (0, i)),
        compiler_params=pltpu.CompilerParams(
            dimension_semantics=("parallel",),
        ),
        cost_estimate=cost,
    )(*args)

    return out[0, :B].reshape(B, 1)                     # [B, 1] f32


def init_params(key):
    """PyTorch-layout params: W [out, in], b [out], U[-1/sqrt(fan_in), +]."""
    dims = [(3, 64), (64, 64), (64, 64), (64, 1)]
    params = []
    for fan_in, fan_out in dims:
        key, kw, kb = jax.random.split(key, 3)
        bound = 1.0 / (fan_in ** 0.5)
        w = jax.random.uniform(kw, (fan_out, fan_in), jnp.float32, -bound, bound)
        b = jax.random.uniform(kb, (fan_out,), jnp.float32, -bound, bound)
        params += [w, b]
    return tuple(params)


def ref_forward(state, action, params):
    """Pure-JAX reference (f32, highest matmul precision)."""
    w1, b1, w2, b2, w3, b3, w4, b4 = params
    hp = jax.lax.Precision.HIGHEST
    sp = lambda v: jnp.where(v > 20.0, v, jnp.log1p(jnp.exp(jnp.minimum(v, 20.0))))
    x = jnp.concatenate([state, action], axis=-1)
    h = sp(jnp.dot(x, w1.T, precision=hp) + b1)
    h = sp(jnp.dot(h, w2.T, precision=hp) + b2)
    h = sp(jnp.dot(h, w3.T, precision=hp) + b3)
    return jnp.dot(h, w4.T, precision=hp) + b4


if __name__ == "__main__":
    key = jax.random.PRNGKey(0)
    kp, ks, ka, ks2, ka2 = jax.random.split(key, 5)

    params = init_params(kp)

    # Small batch (DDPG acting path): padded to one lane-dense 128-wide tile.
    B = 8
    state = jax.random.normal(ks, (B, 2), jnp.float32)    # 2-D state
    action = jax.random.normal(ka, (B, 1), jnp.float32)   # 1-D action
    q = critic_forward(state, action, params, compute_dtype=jnp.float32)
    jax.block_until_ready(q)
    q_ref = ref_forward(state, action, params)
    assert q.shape == (B, 1)
    assert jnp.allclose(q, q_ref, atol=1e-4, rtol=1e-4), (q, q_ref)

    # Larger batch exercising the multi-step batch grid + remainder padding.
    B2 = 300
    state2 = jax.random.normal(ks2, (B2, 2), jnp.float32)
    action2 = jax.random.normal(ka2, (B2, 1), jnp.float32)
    q2 = critic_forward(state2, action2, params, block_b=128,
                        compute_dtype=jnp.float32)
    jax.block_until_ready(q2)
    q2_ref = ref_forward(state2, action2, params)
    assert q2.shape == (B2, 1)
    assert jnp.allclose(q2, q2_ref, atol=1e-4, rtol=1e-4)

    # Chip-default path (bf16 softplus / hidden matmuls on v6e/v7x, f32 on
    # v5e); inputs and layer-1 params stay f32 either way -> loose tolerance.
    q2_def = critic_forward(state2, action2, params)
    jax.block_until_ready(q2_def)
    assert q2_def.shape == (B2, 1)
    assert jnp.allclose(q2_def, q2_ref, atol=0.1, rtol=0.1)

    print("KERNEL_OK")
</pallas_src>

<mosaic_0001>
module attributes {stable_mosaic.version = 11 : i64} {
  func.func @critic_kernel(%arg0: i32, %arg1: memref<2x128xf32, #tpu.memory_space<vmem>>, %arg2: memref<1x128xf32, #tpu.memory_space<vmem>>, %arg3: memref<64x3xf32, #tpu.memory_space<vmem>>, %arg4: memref<64x1xf32, #tpu.memory_space<vmem>>, %arg5: memref<64x64xf32, #tpu.memory_space<vmem>>, %arg6: memref<64x1xf32, #tpu.memory_space<vmem>>, %arg7: memref<64x64xf32, #tpu.memory_space<vmem>>, %arg8: memref<64x1xf32, #tpu.memory_space<vmem>>, %arg9: memref<1x64xf32, #tpu.memory_space<vmem>>, %arg10: memref<1x1xf32, #tpu.memory_space<vmem>>, %arg11: memref<1x128xf32, #tpu.memory_space<vmem>>) attributes {dimension_semantics = [#tpu.dimension_semantics<parallel>], iteration_bounds = array<i64: 1>, scalar_prefetch = 0 : i64, scratch_operands = 0 : i64, tpu.core_type = #tpu.core_type<tc>, window_params = [{transform_indices = @transform_0, window_bounds = array<i64: 2, 128>}, {transform_indices = @transform_1, window_bounds = array<i64: 1, 128>}, {pipeline_mode = #tpu.pipeline_mode<synchronous>, transform_indices = @transform_2, window_bounds = array<i64: 64, 3>}, {pipeline_mode = #tpu.pipeline_mode<synchronous>, transform_indices = @transform_3, window_bounds = array<i64: 64, 1>}, {pipeline_mode = #tpu.pipeline_mode<synchronous>, transform_indices = @transform_4, window_bounds = array<i64: 64, 64>}, {pipeline_mode = #tpu.pipeline_mode<synchronous>, transform_indices = @transform_5, window_bounds = array<i64: 64, 1>}, {pipeline_mode = #tpu.pipeline_mode<synchronous>, transform_indices = @transform_6, window_bounds = array<i64: 64, 64>}, {pipeline_mode = #tpu.pipeline_mode<synchronous>, transform_indices = @transform_7, window_bounds = array<i64: 64, 1>}, {pipeline_mode = #tpu.pipeline_mode<synchronous>, transform_indices = @transform_8, window_bounds = array<i64: 1, 64>}, {pipeline_mode = #tpu.pipeline_mode<synchronous>, transform_indices = @transform_9, window_bounds = array<i64: 1, 1>}, {transform_indices = @transform_10, window_bounds = array<i64: 1, 128>}]} {
    %c0 = arith.constant 0 : index
    %c0_0 = arith.constant 0 : index
    %0 = vector.load %arg1[%c0, %c0_0] : memref<2x128xf32, #tpu.memory_space<vmem>>, vector<2x128xf32>
    %c0_1 = arith.constant 0 : index
    %c0_2 = arith.constant 0 : index
    %1 = vector.load %arg2[%c0_1, %c0_2] : memref<1x128xf32, #tpu.memory_space<vmem>>, vector<1x128xf32>
    %c0_3 = arith.constant 0 : index
    %c0_4 = arith.constant 0 : index
    %2 = vector.load %arg3[%c0_3, %c0_4] : memref<64x3xf32, #tpu.memory_space<vmem>>, vector<64x3xf32>
    %c0_5 = arith.constant 0 : index
    %c0_6 = arith.constant 0 : index
    %3 = vector.load %arg4[%c0_5, %c0_6] : memref<64x1xf32, #tpu.memory_space<vmem>>, vector<64x1xf32>
    %4 = vector.extract_strided_slice %2 {offsets = [0, 0], sizes = [64, 1], strides = [1, 1]} : vector<64x3xf32> to vector<64x1xf32>
    %5 = vector.extract_strided_slice %0 {offsets = [0, 0], sizes = [1, 128], strides = [1, 1]} : vector<2x128xf32> to vector<1x128xf32>
    %6 = vector.broadcast %4 : vector<64x1xf32> to vector<64x128xf32>
    %7 = vector.broadcast %5 : vector<1x128xf32> to vector<64x128xf32>
    %8 = arith.mulf %6, %7 : vector<64x128xf32>
    %9 = vector.extract_strided_slice %2 {offsets = [0, 1], sizes = [64, 1], strides = [1, 1]} : vector<64x3xf32> to vector<64x1xf32>
    %10 = vector.extract_strided_slice %0 {offsets = [1, 0], sizes = [1, 128], strides = [1, 1]} : vector<2x128xf32> to vector<1x128xf32>
    %11 = vector.broadcast %9 : vector<64x1xf32> to vector<64x128xf32>
    %12 = vector.broadcast %10 : vector<1x128xf32> to vector<64x128xf32>
    %13 = arith.mulf %11, %12 : vector<64x128xf32>
    %14 = arith.addf %8, %13 : vector<64x128xf32>
    %15 = vector.extract_strided_slice %2 {offsets = [0, 2], sizes = [64, 1], strides = [1, 1]} : vector<64x3xf32> to vector<64x1xf32>
    %16 = vector.broadcast %15 : vector<64x1xf32> to vector<64x128xf32>
    %17 = vector.broadcast %1 : vector<1x128xf32> to vector<64x128xf32>
    %18 = arith.mulf %16, %17 : vector<64x128xf32>
    %19 = arith.addf %14, %18 : vector<64x128xf32>
    %20 = vector.broadcast %3 : vector<64x1xf32> to vector<64x128xf32>
    %21 = arith.addf %19, %20 : vector<64x128xf32>
    %cst = arith.constant 2.000000e+01 : f32
    %22 = vector.broadcast %cst : f32 to vector<64x128xf32>
    %23 = arith.cmpf ogt, %21, %22 : vector<64x128xf32>
    %24 = math.exp %21 : vector<64x128xf32>
    %25 = math.log1p %24 : vector<64x128xf32>
    %26 = arith.select %23, %21, %25 : vector<64x128xi1>, vector<64x128xf32>
    %c0_7 = arith.constant 0 : index
    %c0_8 = arith.constant 0 : index
    %27 = vector.load %arg5[%c0_7, %c0_8] : memref<64x64xf32, #tpu.memory_space<vmem>>, vector<64x64xf32>
    %cst_9 = arith.constant dense<0.000000e+00> : vector<64x128xf32>
    %28 = tpu.matmul %27, %26, %cst_9 {dimension_numbers = #tpu.dot_dimension_numbers<[1], [0], [0], [1], [0, 0, 1, 1], [], []>} : vector<64x64xf32>, vector<64x128xf32>, vector<64x128xf32> -> vector<64x128xf32>
    %c0_10 = arith.constant 0 : index
    %c0_11 = arith.constant 0 : index
    %29 = vector.load %arg6[%c0_10, %c0_11] : memref<64x1xf32, #tpu.memory_space<vmem>>, vector<64x1xf32>
    %30 = vector.broadcast %29 : vector<64x1xf32> to vector<64x128xf32>
    %31 = arith.addf %28, %30 : vector<64x128xf32>
    %cst_12 = arith.constant 2.000000e+01 : f32
    %32 = vector.broadcast %cst_12 : f32 to vector<64x128xf32>
    %33 = arith.cmpf ogt, %31, %32 : vector<64x128xf32>
    %34 = math.exp %31 : vector<64x128xf32>
    %35 = math.log1p %34 : vector<64x128xf32>
    %36 = arith.select %33, %31, %35 : vector<64x128xi1>, vector<64x128xf32>
    %c0_13 = arith.constant 0 : index
    %c0_14 = arith.constant 0 : index
    %37 = vector.load %arg7[%c0_13, %c0_14] : memref<64x64xf32, #tpu.memory_space<vmem>>, vector<64x64xf32>
    %cst_15 = arith.constant dense<0.000000e+00> : vector<64x128xf32>
    %38 = tpu.matmul %37, %36, %cst_15 {dimension_numbers = #tpu.dot_dimension_numbers<[1], [0], [0], [1], [0, 0, 1, 1], [], []>} : vector<64x64xf32>, vector<64x128xf32>, vector<64x128xf32> -> vector<64x128xf32>
    %c0_16 = arith.constant 0 : index
    %c0_17 = arith.constant 0 : index
    %39 = vector.load %arg8[%c0_16, %c0_17] : memref<64x1xf32, #tpu.memory_space<vmem>>, vector<64x1xf32>
    %40 = vector.broadcast %39 : vector<64x1xf32> to vector<64x128xf32>
    %41 = arith.addf %38, %40 : vector<64x128xf32>
    %cst_18 = arith.constant 2.000000e+01 : f32
    %42 = vector.broadcast %cst_18 : f32 to vector<64x128xf32>
    %43 = arith.cmpf ogt, %41, %42 : vector<64x128xf32>
    %44 = math.exp %41 : vector<64x128xf32>
    %45 = math.log1p %44 : vector<64x128xf32>
    %46 = arith.select %43, %41, %45 : vector<64x128xi1>, vector<64x128xf32>
    %c0_19 = arith.constant 0 : index
    %c0_20 = arith.constant 0 : index
    %47 = vector.load %arg9[%c0_19, %c0_20] : memref<1x64xf32, #tpu.memory_space<vmem>>, vector<1x64xf32>
    %cst_21 = arith.constant dense<0.000000e+00> : vector<1x128xf32>
    %48 = tpu.matmul %47, %46, %cst_21 {dimension_numbers = #tpu.dot_dimension_numbers<[1], [0], [0], [1], [0, 0, 1, 1], [], []>} : vector<1x64xf32>, vector<64x128xf32>, vector<1x128xf32> -> vector<1x128xf32>
    %c0_22 = arith.constant 0 : index
    %c0_23 = arith.constant 0 : index
    %49 = vector.load %arg10[%c0_22, %c0_23] : memref<1x1xf32, #tpu.memory_space<vmem>>, vector<1x1xf32>
    %50 = vector.broadcast %49 : vector<1x1xf32> to vector<1x128xf32>
    %51 = arith.addf %48, %50 : vector<1x128xf32>
    %c0_24 = arith.constant 0 : index
    %c0_25 = arith.constant 0 : index
    %52 = vector.load %arg11[%c0_24, %c0_25] : memref<1x128xf32, #tpu.memory_space<vmem>>, vector<1x128xf32>
    tpu.vector_store %arg11[%c0_24, %c0_25], %51 {strides = array<i32>} : memref<1x128xf32, #tpu.memory_space<vmem>>, vector<1x128xf32>,
    return
  }
  func.func @transform_0(%arg0: i32) -> (i32, i32) {
    %c0_i32 = arith.constant 0 : i32
    %c0_i32_0 = arith.constant 0 : i32
    return %c0_i32, %arg0 : i32, i32
  }
  func.func @transform_1(%arg0: i32) -> (i32, i32) {
    %c0_i32 = arith.constant 0 : i32
    %c0_i32_0 = arith.constant 0 : i32
    return %c0_i32, %arg0 : i32, i32
  }
  func.func @transform_2(%arg0: i32) -> (i32, i32) {
    %c0_i32 = arith.constant 0 : i32
    %c0_i32_0 = arith.constant 0 : i32
    %c0_i32_1 = arith.constant 0 : i32
    return %c0_i32, %c0_i32_0 : i32, i32
  }
  func.func @transform_3(%arg0: i32) -> (i32, i32) {
    %c0_i32 = arith.constant 0 : i32
    %c0_i32_0 = arith.constant 0 : i32
    %c0_i32_1 = arith.constant 0 : i32
    return %c0_i32, %c0_i32_0 : i32, i32
  }
  func.func @transform_4(%arg0: i32) -> (i32, i32) {
    %c0_i32 = arith.constant 0 : i32
    %c0_i32_0 = arith.constant 0 : i32
    %c0_i32_1 = arith.constant 0 : i32
    return %c0_i32, %c0_i32_0 : i32, i32
  }
  func.func @transform_5(%arg0: i32) -> (i32, i32) {
    %c0_i32 = arith.constant 0 : i32
    %c0_i32_0 = arith.constant 0 : i32
    %c0_i32_1 = arith.constant 0 : i32
    return %c0_i32, %c0_i32_0 : i32, i32
  }
  func.func @transform_6(%arg0: i32) -> (i32, i32) {
    %c0_i32 = arith.constant 0 : i32
    %c0_i32_0 = arith.constant 0 : i32
    %c0_i32_1 = arith.constant 0 : i32
    return %c0_i32, %c0_i32_0 : i32, i32
  }
  func.func @transform_7(%arg0: i32) -> (i32, i32) {
    %c0_i32 = arith.constant 0 : i32
    %c0_i32_0 = arith.constant 0 : i32
    %c0_i32_1 = arith.constant 0 : i32
    return %c0_i32, %c0_i32_0 : i32, i32
  }
  func.func @transform_8(%arg0: i32) -> (i32, i32) {
    %c0_i32 = arith.constant 0 : i32
    %c0_i32_0 = arith.constant 0 : i32
    %c0_i32_1 = arith.constant 0 : i32
    return %c0_i32, %c0_i32_0 : i32, i32
  }
  func.func @transform_9(%arg0: i32) -> (i32, i32) {
    %c0_i32 = arith.constant 0 : i32
    %c0_i32_0 = arith.constant 0 : i32
    %c0_i32_1 = arith.constant 0 : i32
    return %c0_i32, %c0_i32_0 : i32, i32
  }
  func.func @transform_10(%arg0: i32) -> (i32, i32) {
    %c0_i32 = arith.constant 0 : i32
    %c0_i32_0 = arith.constant 0 : i32
    return %c0_i32, %arg0 : i32, i32
  }
}

</mosaic_0001>

<llo_original>
// kernel: tpu_custom_call.1
$region0: #{tpu_custom_call.1}
  #allocation0 [shape = 'u32[]', space=smem, size = 0x4, offset = 0x4, fixed_abs, tag = 'smem constant byte address 0x4 - core index']
  #allocation1 [shape = 'u32[144,128]{1,0:T(1,128)}', space=vmem, size = 0x12000, scoped, tag = 'internal scratch']
  #allocation2 [shape = 'f32[1,1]{1,0:T(1,128)S(1)}', space=vmem, size = 0x200, scoped, tag = 'scoped memory for tpu_custom_call.1']
  %s0 = inlined_call_operand.vmem [shape: f32[2,128], index: 0, kind: input, shape index: {}]
  %s1 = inlined_call_operand.vmem [shape: f32[1,128], index: 1, kind: input, shape index: {}]
  %s2 = inlined_call_operand.vmem [shape: f32[64,3], index: 2, kind: input, shape index: {}]
  %s3 = inlined_call_operand.vmem [shape: f32[64,1], index: 3, kind: input, shape index: {}]
  %s4 = inlined_call_operand.vmem [shape: f32[64,64], index: 4, kind: input, shape index: {}]
  %s5 = inlined_call_operand.vmem [shape: f32[64,1], index: 5, kind: input, shape index: {}]
  %s6 = inlined_call_operand.vmem [shape: f32[64,64], index: 6, kind: input, shape index: {}]
  %s7 = inlined_call_operand.vmem [shape: f32[64,1], index: 7, kind: input, shape index: {}]
  %s8 = inlined_call_operand.vmem [shape: f32[1,64], index: 8, kind: input, shape index: {}]
  %s9 = inlined_call_operand.<no memory space> [shape: f32[1,1], index: 9, kind: input, shape index: {}]
  %s10 = inlined_call_operand.hbm [shape: f32[1,128], index: 10, kind: output, shape index: {}]
  %s11 = sld [smem:[#allocation0]]
  $region50: #{tpu_custom_call.1} parent=0
    _
  %s13 = ssub.s32 1, %s11
  %s14 = scalar_select 0, %s13, %s11
  %v15 = vstv %s9
  %16 = vst [vmem:[#allocation2] sm:$0x1] %v15
  $region1: #{tpu_custom_call.1} parent=0
    #allocation3 [shape = 'u8[512]{0}', space=vmem, size = 0x400, scoped, tag = 'output window, operand 0, single buffered']
    #allocation4 [shape = 's32[1]{0}', space=sflag, size = 0x4, scoped, tag = 'scoped memory for tpu_custom_call.1']
    %17 = vsyncpa [#allocation4], 0
    // Predicated region
    $region2: #{tpu_custom_call.1} parent=1 // pred_check
      _
    $region3: #{tpu_custom_call.1} parent=1 // pred_check_branch
      %19 = sbr.rel (0) target = $region5
    $region4: #{tpu_custom_call.1} parent=1 // pred_region
      _
    $region5: #{tpu_custom_call.1} parent=1 // pred_fallthru
      _
    // Predicated region
    $region6: #{tpu_custom_call.1} parent=1 // pred_check
      _
    $region7: #{tpu_custom_call.1} parent=1 // pred_check_branch
      %21 = sbr.rel (0) target = $region9
    $region8: #{tpu_custom_call.1} parent=1 // pred_region
      _
    $region9: #{tpu_custom_call.1} parent=1 // pred_fallthru
      _
    // Predicated region
    $region10: #{tpu_custom_call.1} parent=1 // pred_check
      _
    $region11: #{tpu_custom_call.1} parent=1 // pred_check_branch
      %23 = sbr.rel (0) target = $region13
    $region12: #{tpu_custom_call.1} parent=1 // pred_region
      _
    $region13: #{tpu_custom_call.1} parent=1 // pred_fallthru
      _
    // Predicated region
    $region14: #{tpu_custom_call.1} parent=1 // pred_check
      _
    $region15: #{tpu_custom_call.1} parent=1 // pred_check_branch
      %25 = sbr.rel (0) target = $region17
    $region16: #{tpu_custom_call.1} parent=1 // pred_region
      _
    $region17: #{tpu_custom_call.1} parent=1 // pred_fallthru
      _
    // Predicated region
    $region18: #{tpu_custom_call.1} parent=1 // pred_check
      _
    $region19: #{tpu_custom_call.1} parent=1 // pred_check_branch
      %27 = sbr.rel (0) target = $region21
    $region20: #{tpu_custom_call.1} parent=1 // pred_region
      _
    $region21: #{tpu_custom_call.1} parent=1 // pred_fallthru
      _
    // Predicated region
    $region22: #{tpu_custom_call.1} parent=1 // pred_check
      _
    $region23: #{tpu_custom_call.1} parent=1 // pred_check_branch
      %29 = sbr.rel (0) target = $region25
    $region24: #{tpu_custom_call.1} parent=1 // pred_region
      _
    $region25: #{tpu_custom_call.1} parent=1 // pred_fallthru
      _
    // Predicated region
    $region26: #{tpu_custom_call.1} parent=1 // pred_check
      _
    $region27: #{tpu_custom_call.1} parent=1 // pred_check_branch
      %31 = sbr.rel (0) target = $region29
    $region28: #{tpu_custom_call.1} parent=1 // pred_region
      _
    $region29: #{tpu_custom_call.1} parent=1 // pred_fallthru
      _
    // Predicated region
    $region30: #{tpu_custom_call.1} parent=1 // pred_check
      _
    $region31: #{tpu_custom_call.1} parent=1 // pred_check_branch
      %33 = sbr.rel (0) target = $region33
    $region32: #{tpu_custom_call.1} parent=1 // pred_region
      _
    $region33: #{tpu_custom_call.1} parent=1 // pred_fallthru
      _
    // Predicated region
    $region34: #{tpu_custom_call.1} parent=1 // pred_check
      _
    $region35: #{tpu_custom_call.1} parent=1 // pred_check_branch
      %35 = sbr.rel (0) target = $region37
    $region36: #{tpu_custom_call.1} parent=1 // pred_region
      _
    $region37: #{tpu_custom_call.1} parent=1 // pred_fallthru
      _
    // Predicated region
    $region38: #{tpu_custom_call.1} parent=1 // pred_check
      _
    $region39: #{tpu_custom_call.1} parent=1 // pred_check_branch
      %37 = sbr.rel (0) target = $region41
    $region40: #{tpu_custom_call.1} parent=1 // pred_region
      _
    $region41: #{tpu_custom_call.1} parent=1 // pred_fallthru
      _
    %v38 = vld [vmem:[%s0] sm:$0x3]
    %v39 = vld [vmem:[%s1] sm:$0x1]
    %v40 = vld [vmem:[%s2] sm:$0xff]
    %v41 = vld [vmem:[%s2 + $0x8] sm:$0xff]
    %v42 = vld [vmem:[%s2 + $0x10] sm:$0xff]
    %v43 = vld [vmem:[%s2 + $0x18] sm:$0xff]
    %v44 = vld [vmem:[%s2 + $0x20] sm:$0xff]
    %v45 = vld [vmem:[%s2 + $0x28] sm:$0xff]
    %v46 = vld [vmem:[%s2 + $0x30] sm:$0xff]
    %v47 = vld [vmem:[%s2 + $0x38] sm:$0xff]
    %v48 = vld [vmem:[%s3] sm:$0xff]
    %v49 = vld [vmem:[%s3 + $0x8] sm:$0xff]
    %v50 = vld [vmem:[%s3 + $0x10] sm:$0xff]
    %v51 = vld [vmem:[%s3 + $0x18] sm:$0xff]
    %v52 = vld [vmem:[%s3 + $0x20] sm:$0xff]
    %v53 = vld [vmem:[%s3 + $0x28] sm:$0xff]
    %v54 = vld [vmem:[%s3 + $0x30] sm:$0xff]
    %v55 = vld [vmem:[%s3 + $0x38] sm:$0xff]
    %57 = vset.pattern.permute.xlu0 0
    %58 = vperm.xlu0 %57, %v40
    %v59 = vpop.permute.xlu0 %58
    %62 = vset.pattern.permute.xlu0 0
    %63 = vperm.xlu0 %62, %v41
    %v64 = vpop.permute.xlu0 %63
    %67 = vset.pattern.permute.xlu0 0
    %68 = vperm.xlu0 %67, %v42
    %v69 = vpop.permute.xlu0 %68
    %72 = vset.pattern.permute.xlu0 0
    %73 = vperm.xlu0 %72, %v43
    %v74 = vpop.permute.xlu0 %73
    %77 = vset.pattern.permute.xlu0 0
    %78 = vperm.xlu0 %77, %v44
    %v79 = vpop.permute.xlu0 %78
    %82 = vset.pattern.permute.xlu0 0
    %83 = vperm.xlu0 %82, %v45
    %v84 = vpop.permute.xlu0 %83
    %87 = vset.pattern.permute.xlu0 0
    %88 = vperm.xlu0 %87, %v46
    %v89 = vpop.permute.xlu0 %88
    %92 = vset.pattern.permute.xlu0 0
    %93 = vperm.xlu0 %92, %v47
    %v94 = vpop.permute.xlu0 %93
    %v96 = vlaneseq
    %v97 = vshrl.u32 %v96, 7
    %v98 = vsub.s32 0, %v97
    %v99 = vrot.slane %v38, %v98
    %v100 = vmul.f32 %v59, %v99
    %v101 = vmul.f32 %v64, %v99
    %v102 = vmul.f32 %v69, %v99
    %v103 = vmul.f32 %v74, %v99
    %v104 = vmul.f32 %v79, %v99
    %v105 = vmul.f32 %v84, %v99
    %v106 = vmul.f32 %v89, %v99
    %v107 = vmul.f32 %v94, %v99
    %108 = vset.pattern.permute.xlu0 1
    %109 = vperm.xlu0 %108, %v40
    %v110 = vpop.permute.xlu0 %109
    %112 = vset.pattern.permute.xlu0 1
    %113 = vperm.xlu0 %112, %v41
    %v114 = vpop.permute.xlu0 %113
    %116 = vset.pattern.permute.xlu0 1
    %117 = vperm.xlu0 %116, %v42
    %v118 = vpop.permute.xlu0 %117
    %120 = vset.pattern.permute.xlu0 1
    %121 = vperm.xlu0 %120, %v43
    %v122 = vpop.permute.xlu0 %121
    %124 = vset.pattern.permute.xlu0 1
    %125 = vperm.xlu0 %124, %v44
    %v126 = vpop.permute.xlu0 %125
    %128 = vset.pattern.permute.xlu0 1
    %129 = vperm.xlu0 %128, %v45
    %v130 = vpop.permute.xlu0 %129
    %132 = vset.pattern.permute.xlu0 1
    %133 = vperm.xlu0 %132, %v46
    %v134 = vpop.permute.xlu0 %133
    %136 = vset.pattern.permute.xlu0 1
    %137 = vperm.xlu0 %136, %v47
    %v138 = vpop.permute.xlu0 %137
    %v140 = vlaneseq
    %v141 = vshrl.u32 %v140, 7
    %v142 = vsub.s32 1, %v141
    %v143 = vrot.slane %v38, %v142
    %v144 = vmul.f32 %v110, %v143
    %v145 = vmul.f32 %v114, %v143
    %v146 = vmul.f32 %v118, %v143
    %v147 = vmul.f32 %v122, %v143
    %v148 = vmul.f32 %v126, %v143
    %v149 = vmul.f32 %v130, %v143
    %v150 = vmul.f32 %v134, %v143
    %v151 = vmul.f32 %v138, %v143
    %v152 = vadd.f32 %v100, %v144
    %v153 = vadd.f32 %v101, %v145
    %v154 = vadd.f32 %v102, %v146
    %v155 = vadd.f32 %v103, %v147
    %v156 = vadd.f32 %v104, %v148
    %v157 = vadd.f32 %v105, %v149
    %v158 = vadd.f32 %v106, %v150
    %v159 = vadd.f32 %v107, %v151
    %160 = vset.pattern.permute.xlu0 2
    %161 = vperm.xlu0 %160, %v40
    %v162 = vpop.permute.xlu0 %161
    %164 = vset.pattern.permute.xlu0 2
    %165 = vperm.xlu0 %164, %v41
    %v166 = vpop.permute.xlu0 %165
    %168 = vset.pattern.permute.xlu0 2
    %169 = vperm.xlu0 %168, %v42
    %v170 = vpop.permute.xlu0 %169
    %172 = vset.pattern.permute.xlu0 2
    %173 = vperm.xlu0 %172, %v43
    %v174 = vpop.permute.xlu0 %173
    %176 = vset.pattern.permute.xlu0 2
    %177 = vperm.xlu0 %176, %v44
    %v178 = vpop.permute.xlu0 %177
    %180 = vset.pattern.permute.xlu0 2
    %181 = vperm.xlu0 %180, %v45
    %v182 = vpop.permute.xlu0 %181
    %184 = vset.pattern.permute.xlu0 2
    %185 = vperm.xlu0 %184, %v46
    %v186 = vpop.permute.xlu0 %185
    %188 = vset.pattern.permute.xlu0 2
    %189 = vperm.xlu0 %188, %v47
    %v190 = vpop.permute.xlu0 %189
    %v193 = vlaneseq
    %v194 = vshrl.u32 %v193, 7
    %v195 = vsub.s32 0, %v194
    %v196 = vrot.slane %v39, %v195
    %v198 = vmul.f32 %v162, %v196
    %v199 = vmul.f32 %v166, %v196
    %v200 = vmul.f32 %v170, %v196
    %v201 = vmul.f32 %v174, %v196
    %v202 = vmul.f32 %v178, %v196
    %v203 = vmul.f32 %v182, %v196
    %v204 = vmul.f32 %v186, %v196
    %v205 = vmul.f32 %v190, %v196
    %v206 = vadd.f32 %v152, %v198
    %v207 = vadd.f32 %v153, %v199
    %v208 = vadd.f32 %v154, %v200
    %v209 = vadd.f32 %v155, %v201
    %v210 = vadd.f32 %v156, %v202
    %v211 = vadd.f32 %v157, %v203
    %v212 = vadd.f32 %v158, %v204
    %v213 = vadd.f32 %v159, %v205
    %215 = vset.pattern.permute.xlu0 0
    %216 = vperm.xlu0 %215, %v48
    %v217 = vpop.permute.xlu0 %216
    %220 = vset.pattern.permute.xlu0 0
    %221 = vperm.xlu0 %220, %v49
    %v222 = vpop.permute.xlu0 %221
    %225 = vset.pattern.permute.xlu0 0
    %226 = vperm.xlu0 %225, %v50
    %v227 = vpop.permute.xlu0 %226
    %230 = vset.pattern.permute.xlu0 0
    %231 = vperm.xlu0 %230, %v51
    %v232 = vpop.permute.xlu0 %231
    %235 = vset.pattern.permute.xlu0 0
    %236 = vperm.xlu0 %235, %v52
    %v237 = vpop.permute.xlu0 %236
    %240 = vset.pattern.permute.xlu0 0
    %241 = vperm.xlu0 %240, %v53
    %v242 = vpop.permute.xlu0 %241
    %245 = vset.pattern.permute.xlu0 0
    %246 = vperm.xlu0 %245, %v54
    %v247 = vpop.permute.xlu0 %246
    %250 = vset.pattern.permute.xlu0 0
    %251 = vperm.xlu0 %250, %v55
    %v252 = vpop.permute.xlu0 %251
    %v254 = vadd.f32 %v206, %v217
    %v255 = vadd.f32 %v207, %v222
    %v256 = vadd.f32 %v208, %v227
    %v257 = vadd.f32 %v209, %v232
    %v258 = vadd.f32 %v210, %v237
    %v259 = vadd.f32 %v211, %v242
    %v260 = vadd.f32 %v212, %v247
    %v261 = vadd.f32 %v213, %v252
    %vm262 = vcmp.gt.f32.partialorder %v254, 20.0
    %vm263 = vcmp.gt.f32.partialorder %v255, 20.0
    %vm264 = vcmp.gt.f32.partialorder %v256, 20.0
    %vm265 = vcmp.gt.f32.partialorder %v257, 20.0
    %vm266 = vcmp.gt.f32.partialorder %v258, 20.0
    %vm267 = vcmp.gt.f32.partialorder %v259, 20.0
    %vm268 = vcmp.gt.f32.partialorder %v260, 20.0
    %vm269 = vcmp.gt.f32.partialorder %v261, 20.0
    %v270 = vmul.f32 %v254, 1.442695
    %v271 = vpow.pop %v270
    %v272 = vmul.f32 %v255, 1.442695
    %v273 = vpow.pop %v272
    %v274 = vmul.f32 %v256, 1.442695
    %v275 = vpow.pop %v274
    %v276 = vmul.f32 %v257, 1.442695
    %v277 = vpow.pop %v276
    %v278 = vmul.f32 %v258, 1.442695
    %v279 = vpow.pop %v278
    %v280 = vmul.f32 %v259, 1.442695
    %v281 = vpow.pop %v280
    %v282 = vmul.f32 %v260, 1.442695
    %v283 = vpow.pop %v282
    %v284 = vmul.f32 %v261, 1.442695
    %v285 = vpow.pop %v284
    %v286 = vadd.f32 %v271, 1.0
    %v287 = vlog2.pop %v286
    %v288 = vmul.f32 %v287, 0.6931472
    %v289 = vmul.f32 -0.5, %v271
    %v290 = vadd.f32 %v289, 1.0
    %v291 = vmul.f32 %v290, %v271
    %v292 = vand.u32 2147483647, %v271
    %vm293 = vcmp.lt.f32.partialorder %v292, 0.0004427343
    %v294 = vsel %vm293, %v291, %v288
    %v295 = vadd.f32 %v273, 1.0
    %v296 = vlog2.pop %v295
    %v297 = vmul.f32 %v296, 0.6931472
    %v298 = vmul.f32 -0.5, %v273
    %v299 = vadd.f32 %v298, 1.0
    %v300 = vmul.f32 %v299, %v273
    %v301 = vand.u32 2147483647, %v273
    %vm302 = vcmp.lt.f32.partialorder %v301, 0.0004427343
    %v303 = vsel %vm302, %v300, %v297
    %v304 = vadd.f32 %v275, 1.0
    %v305 = vlog2.pop %v304
    %v306 = vmul.f32 %v305, 0.6931472
    %v307 = vmul.f32 -0.5, %v275
    %v308 = vadd.f32 %v307, 1.0
    %v309 = vmul.f32 %v308, %v275
    %v310 = vand.u32 2147483647, %v275
    %vm311 = vcmp.lt.f32.partialorder %v310, 0.0004427343
    %v312 = vsel %vm311, %v309, %v306
    %v313 = vadd.f32 %v277, 1.0
    %v314 = vlog2.pop %v313
    %v315 = vmul.f32 %v314, 0.6931472
    %v316 = vmul.f32 -0.5, %v277
    %v317 = vadd.f32 %v316, 1.0
    %v318 = vmul.f32 %v317, %v277
    %v319 = vand.u32 2147483647, %v277
    %vm320 = vcmp.lt.f32.partialorder %v319, 0.0004427343
    %v321 = vsel %vm320, %v318, %v315
    %v322 = vadd.f32 %v279, 1.0
    %v323 = vlog2.pop %v322
    %v324 = vmul.f32 %v323, 0.6931472
    %v325 = vmul.f32 -0.5, %v279
    %v326 = vadd.f32 %v325, 1.0
    %v327 = vmul.f32 %v326, %v279
    %v328 = vand.u32 2147483647, %v279
    %vm329 = vcmp.lt.f32.partialorder %v328, 0.0004427343
    %v330 = vsel %vm329, %v327, %v324
    %v331 = vadd.f32 %v281, 1.0
    %v332 = vlog2.pop %v331
    %v333 = vmul.f32 %v332, 0.6931472
    %v334 = vmul.f32 -0.5, %v281
    %v335 = vadd.f32 %v334, 1.0
    %v336 = vmul.f32 %v335, %v281
    %v337 = vand.u32 2147483647, %v281
    %vm338 = vcmp.lt.f32.partialorder %v337, 0.0004427343
    %v339 = vsel %vm338, %v336, %v333
    %v340 = vadd.f32 %v283, 1.0
    %v341 = vlog2.pop %v340
    %v342 = vmul.f32 %v341, 0.6931472
    %v343 = vmul.f32 -0.5, %v283
    %v344 = vadd.f32 %v343, 1.0
    %v345 = vmul.f32 %v344, %v283
    %v346 = vand.u32 2147483647, %v283
    %vm347 = vcmp.lt.f32.partialorder %v346, 0.0004427343
    %v348 = vsel %vm347, %v345, %v342
    %v349 = vadd.f32 %v285, 1.0
    %v350 = vlog2.pop %v349
    %v351 = vmul.f32 %v350, 0.6931472
    %v352 = vmul.f32 -0.5, %v285
    %v353 = vadd.f32 %v352, 1.0
    %v354 = vmul.f32 %v353, %v285
    %v355 = vand.u32 2147483647, %v285
    %vm356 = vcmp.lt.f32.partialorder %v355, 0.0004427343
    %v357 = vsel %vm356, %v354, %v351
    %v358 = vsel %vm262, %v254, %v294
    %v359 = vsel %vm263, %v255, %v303
    %v360 = vsel %vm264, %v256, %v312
    %v361 = vsel %vm265, %v257, %v321
    %v362 = vsel %vm266, %v258, %v330
    %v363 = vsel %vm267, %v259, %v339
    %v364 = vsel %vm268, %v260, %v348
    %v365 = vsel %vm269, %v261, %v357
    %v366 = vld [vmem:[%s4] sm:$0xff]
    %v367 = vld [vmem:[%s4 + $0x8] sm:$0xff]
    %v368 = vld [vmem:[%s4 + $0x10] sm:$0xff]
    %v369 = vld [vmem:[%s4 + $0x18] sm:$0xff]
    %v370 = vld [vmem:[%s4 + $0x20] sm:$0xff]
    %v371 = vld [vmem:[%s4 + $0x28] sm:$0xff]
    %v372 = vld [vmem:[%s4 + $0x30] sm:$0xff]
    %v373 = vld [vmem:[%s4 + $0x38] sm:$0xff]
    %v374 = vld [vmem:[%s5] sm:$0xff]
    %v375 = vld [vmem:[%s5 + $0x8] sm:$0xff]
    %v376 = vld [vmem:[%s5 + $0x10] sm:$0xff]
    %v377 = vld [vmem:[%s5 + $0x18] sm:$0xff]
    %v378 = vld [vmem:[%s5 + $0x20] sm:$0xff]
    %v379 = vld [vmem:[%s5 + $0x28] sm:$0xff]
    %v380 = vld [vmem:[%s5 + $0x30] sm:$0xff]
    %v381 = vld [vmem:[%s5 + $0x38] sm:$0xff]
    %383 = vset.pattern.permute.xlu0 0
    %384 = vperm.xlu0 %383, %v374
    %v385 = vpop.permute.xlu0 %384
    %388 = vset.pattern.permute.xlu0 0
    %389 = vperm.xlu0 %388, %v375
    %v390 = vpop.permute.xlu0 %389
    %393 = vset.pattern.permute.xlu0 0
    %394 = vperm.xlu0 %393, %v376
    %v395 = vpop.permute.xlu0 %394
    %398 = vset.pattern.permute.xlu0 0
    %399 = vperm.xlu0 %398, %v377
    %v400 = vpop.permute.xlu0 %399
    %403 = vset.pattern.permute.xlu0 0
    %404 = vperm.xlu0 %403, %v378
    %v405 = vpop.permute.xlu0 %404
    %408 = vset.pattern.permute.xlu0 0
    %409 = vperm.xlu0 %408, %v379
    %v410 = vpop.permute.xlu0 %409
    %413 = vset.pattern.permute.xlu0 0
    %414 = vperm.xlu0 %413, %v380
    %v415 = vpop.permute.xlu0 %414
    %418 = vset.pattern.permute.xlu0 0
    %419 = vperm.xlu0 %418, %v381
    %v420 = vpop.permute.xlu0 %419
    %vm422 = vcmask 523264
    %v424 = vsel %vm422, %v366, 0
    %v427 = vsel %vm422, %v367, 0
    %v430 = vsel %vm422, %v368, 0
    %v433 = vsel %vm422, %v369, 0
    %v436 = vsel %vm422, %v370, 0
    %v439 = vsel %vm422, %v371, 0
    %v442 = vsel %vm422, %v372, 0
    %v445 = vsel %vm422, %v373, 0
    %447 = vmatprep.subr.mxu0 0.0
    %448 = vmatpush1.msra.mxu0 %v358
    %449 = vmatprep.subr.mxu0 0.0
    %450 = vmatpush1.msra.mxu0 %v359
    %451 = vmatprep.subr.mxu0 0.0
    %452 = vmatpush1.msra.mxu0 %v360
    %453 = vmatprep.subr.mxu0 0.0
    %454 = vmatpush1.msra.mxu0 %v361
    %455 = vmatprep.subr.mxu0 0.0
    %456 = vmatpush1.msra.mxu0 %v362
    %457 = vmatprep.subr.mxu0 0.0
    %458 = vmatpush1.msra.mxu0 %v363
    %459 = vmatprep.subr.mxu0 0.0
    %460 = vmatpush1.msra.mxu0 %v364
    %461 = vmatprep.subr.mxu0 0.0
    %462 = vmatpush1.msra.mxu0 %v365
    %463 = vmatprep.subr.mxu0 0.0
    %464 = vmatpush1.msra.mxu0 0.0
    %465 = vmatprep.subr.mxu0 0.0
    %466 = vmatpush1.msra.mxu0 0.0
    %467 = vmatprep.subr.mxu0 0.0
    %468 = vmatpush1.msra.mxu0 0.0
    %469 = vmatprep.subr.mxu0 0.0
    %470 = vmatpush1.msra.mxu0 0.0
    %471 = vmatprep.subr.mxu0 0.0
    %472 = vmatpush1.msra.mxu0 0.0
    %473 = vmatprep.subr.mxu0 0.0
    %474 = vmatpush1.msra.mxu0 0.0
    %475 = vmatprep.subr.mxu0 0.0
    %476 = vmatpush1.msra.mxu0 0.0
    %477 = vmatprep.subr.mxu0 0.0
    %478 = vmatpush1.msra.mxu0 0.0
    %479 = vmatprep.subr.mxu0 0.0
    %480 = vmatpush1.msra.mxu0 0.0
    %481 = vmatprep.subr.mxu0 0.0
    %482 = vmatpush1.msra.mxu0 0.0
    %483 = vmatprep.subr.mxu0 0.0
    %484 = vmatpush1.msra.mxu0 0.0
    %485 = vmatprep.subr.mxu0 0.0
    %486 = vmatpush1.msra.mxu0 0.0
    %487 = vmatprep.subr.mxu0 0.0
    %488 = vmatpush1.msra.mxu0 0.0
    %489 = vmatprep.subr.mxu0 0.0
    %490 = vmatpush1.msra.mxu0 0.0
    %491 = vmatprep.subr.mxu0 0.0
    %492 = vmatpush1.msra.mxu0 0.0
    %493 = vmatprep.subr.mxu0 0.0
    %494 = vmatpush1.msra.mxu0 0.0
    %495 = vmatprep.subr.mxu0 0.0
    %496 = vmatpush1.msra.mxu0 0.0
    %497 = vmatprep.subr.mxu0 0.0
    %498 = vmatpush1.msra.mxu0 0.0
    %499 = vmatprep.subr.mxu0 0.0
    %500 = vmatpush1.msra.mxu0 0.0
    %501 = vmatprep.subr.mxu0 0.0
    %502 = vmatpush1.msra.mxu0 0.0
    %503 = vmatprep.subr.mxu0 0.0
    %504 = vmatpush1.msra.mxu0 0.0
    %505 = vmatprep.subr.mxu0 0.0
    %506 = vmatpush1.msra.mxu0 0.0
    %507 = vmatprep.subr.mxu0 0.0
    %508 = vmatpush1.msra.mxu0 0.0
    %509 = vmatprep.subr.mxu0 0.0
    %510 = vmatpush1.msra.mxu0 0.0
    %511 = vmatprep.mubr.f32.mxu0 0.0
    %512 = vmatmul.mubr.f32.gmra.mrb[0].mxu0 %v424
    %v513 = vpop.f32.mrb[0].mxu0
    %v514 = vadd.f32 %v385, %v513
    %v515 = vpop.f32.mrb[0].mxu0
    %516 = vmatprep.mubr.f32.mxu0 0.0
    %517 = vmatmul.mubr.f32.gmra.mrb[0].mxu0 %v427
    %v518 = vpop.f32.mrb[0].mxu0
    %v519 = vadd.f32 %v390, %v518
    %v520 = vpop.f32.mrb[0].mxu0
    %521 = vmatprep.mubr.f32.mxu0 0.0
    %522 = vmatmul.mubr.f32.gmra.mrb[0].mxu0 %v430
    %v523 = vpop.f32.mrb[0].mxu0
    %v524 = vadd.f32 %v395, %v523
    %v525 = vpop.f32.mrb[0].mxu0
    %526 = vmatprep.mubr.f32.mxu0 0.0
    %527 = vmatmul.mubr.f32.gmra.mrb[0].mxu0 %v433
    %v528 = vpop.f32.mrb[0].mxu0
    %v529 = vadd.f32 %v400, %v528
    %v530 = vpop.f32.mrb[0].mxu0
    %531 = vmatprep.mubr.f32.mxu0 0.0
    %532 = vmatmul.mubr.f32.gmra.mrb[0].mxu0 %v436
    %v533 = vpop.f32.mrb[0].mxu0
    %v534 = vadd.f32 %v405, %v533
    %v535 = vpop.f32.mrb[0].mxu0
    %536 = vmatprep.mubr.f32.mxu0 0.0
    %537 = vmatmul.mubr.f32.gmra.mrb[0].mxu0 %v439
    %v538 = vpop.f32.mrb[0].mxu0
    %v539 = vadd.f32 %v410, %v538
    %v540 = vpop.f32.mrb[0].mxu0
    %541 = vmatprep.mubr.f32.mxu0 0.0
    %542 = vmatmul.mubr.f32.gmra.mrb[0].mxu0 %v442
    %v543 = vpop.f32.mrb[0].mxu0
    %v544 = vadd.f32 %v415, %v543
    %v545 = vpop.f32.mrb[0].mxu0
    %546 = vmatprep.mubr.f32.mxu0 0.0
    %547 = vmatmul.mubr.f32.gmra.mrb[0].mxu0 %v445
    %v548 = vpop.f32.mrb[0].mxu0
    %v549 = vadd.f32 %v420, %v548
    %v550 = vpop.f32.mrb[0].mxu0
    %551 = vdwg.mxu0
    %vm552 = vcmp.gt.f32.partialorder %v514, 20.0
    %vm553 = vcmp.gt.f32.partialorder %v519, 20.0
    %vm554 = vcmp.gt.f32.partialorder %v524, 20.0
    %vm555 = vcmp.gt.f32.partialorder %v529, 20.0
    %vm556 = vcmp.gt.f32.partialorder %v534, 20.0
    %vm557 = vcmp.gt.f32.partialorder %v539, 20.0
    %vm558 = vcmp.gt.f32.partialorder %v544, 20.0
    %vm559 = vcmp.gt.f32.partialorder %v549, 20.0
    %v560 = vmul.f32 %v514, 1.442695
    %v561 = vpow.pop %v560
    %v562 = vmul.f32 %v519, 1.442695
    %v563 = vpow.pop %v562
    %v564 = vmul.f32 %v524, 1.442695
    %v565 = vpow.pop %v564
    %v566 = vmul.f32 %v529, 1.442695
    %v567 = vpow.pop %v566
    %v568 = vmul.f32 %v534, 1.442695
    %v569 = vpow.pop %v568
    %v570 = vmul.f32 %v539, 1.442695
    %v571 = vpow.pop %v570
    %v572 = vmul.f32 %v544, 1.442695
    %v573 = vpow.pop %v572
    %v574 = vmul.f32 %v549, 1.442695
    %v575 = vpow.pop %v574
    %v576 = vadd.f32 %v561, 1.0
    %v577 = vlog2.pop %v576
    %v578 = vmul.f32 %v577, 0.6931472
    %v579 = vmul.f32 -0.5, %v561
    %v580 = vadd.f32 %v579, 1.0
    %v581 = vmul.f32 %v580, %v561
    %v582 = vand.u32 2147483647, %v561
    %vm583 = vcmp.lt.f32.partialorder %v582, 0.0004427343
    %v584 = vsel %vm583, %v581, %v578
    %v585 = vadd.f32 %v563, 1.0
    %v586 = vlog2.pop %v585
    %v587 = vmul.f32 %v586, 0.6931472
    %v588 = vmul.f32 -0.5, %v563
    %v589 = vadd.f32 %v588, 1.0
    %v590 = vmul.f32 %v589, %v563
    %v591 = vand.u32 2147483647, %v563
    %vm592 = vcmp.lt.f32.partialorder %v591, 0.0004427343
    %v593 = vsel %vm592, %v590, %v587
    %v594 = vadd.f32 %v565, 1.0
    %v595 = vlog2.pop %v594
    %v596 = vmul.f32 %v595, 0.6931472
    %v597 = vmul.f32 -0.5, %v565
    %v598 = vadd.f32 %v597, 1.0
    %v599 = vmul.f32 %v598, %v565
    %v600 = vand.u32 2147483647, %v565
    %vm601 = vcmp.lt.f32.partialorder %v600, 0.0004427343
    %v602 = vsel %vm601, %v599, %v596
    %v603 = vadd.f32 %v567, 1.0
    %v604 = vlog2.pop %v603
    %v605 = vmul.f32 %v604, 0.6931472
    %v606 = vmul.f32 -0.5, %v567
    %v607 = vadd.f32 %v606, 1.0
    %v608 = vmul.f32 %v607, %v567
    %v609 = vand.u32 2147483647, %v567
    %vm610 = vcmp.lt.f32.partialorder %v609, 0.0004427343
    %v611 = vsel %vm610, %v608, %v605
    %v612 = vadd.f32 %v569, 1.0
    %v613 = vlog2.pop %v612
    %v614 = vmul.f32 %v613, 0.6931472
    %v615 = vmul.f32 -0.5, %v569
    %v616 = vadd.f32 %v615, 1.0
    %v617 = vmul.f32 %v616, %v569
    %v618 = vand.u32 2147483647, %v569
    %vm619 = vcmp.lt.f32.partialorder %v618, 0.0004427343
    %v620 = vsel %vm619, %v617, %v614
    %v621 = vadd.f32 %v571, 1.0
    %v622 = vlog2.pop %v621
    %v623 = vmul.f32 %v622, 0.6931472
    %v624 = vmul.f32 -0.5, %v571
    %v625 = vadd.f32 %v624, 1.0
    %v626 = vmul.f32 %v625, %v571
    %v627 = vand.u32 2147483647, %v571
    %vm628 = vcmp.lt.f32.partialorder %v627, 0.0004427343
    %v629 = vsel %vm628, %v626, %v623
    %v630 = vadd.f32 %v573, 1.0
    %v631 = vlog2.pop %v630
    %v632 = vmul.f32 %v631, 0.6931472
    %v633 = vmul.f32 -0.5, %v573
    %v634 = vadd.f32 %v633, 1.0
    %v635 = vmul.f32 %v634, %v573
    %v636 = vand.u32 2147483647, %v573
    %vm637 = vcmp.lt.f32.partialorder %v636, 0.0004427343
    %v638 = vsel %vm637, %v635, %v632
    %v639 = vadd.f32 %v575, 1.0
    %v640 = vlog2.pop %v639
    %v641 = vmul.f32 %v640, 0.6931472
    %v642 = vmul.f32 -0.5, %v575
    %v643 = vadd.f32 %v642, 1.0
    %v644 = vmul.f32 %v643, %v575
    %v645 = vand.u32 2147483647, %v575
    %vm646 = vcmp.lt.f32.partialorder %v645, 0.0004427343
    %v647 = vsel %vm646, %v644, %v641
    %v648 = vsel %vm552, %v514, %v584
    %v649 = vsel %vm553, %v519, %v593
    %v650 = vsel %vm554, %v524, %v602
    %v651 = vsel %vm555, %v529, %v611
    %v652 = vsel %vm556, %v534, %v620
    %v653 = vsel %vm557, %v539, %v629
    %v654 = vsel %vm558, %v544, %v638
    %v655 = vsel %vm559, %v549, %v647
    %v656 = vld [vmem:[%s6] sm:$0xff]
    %v657 = vld [vmem:[%s6 + $0x8] sm:$0xff]
    %v658 = vld [vmem:[%s6 + $0x10] sm:$0xff]
    %v659 = vld [vmem:[%s6 + $0x18] sm:$0xff]
    %v660 = vld [vmem:[%s6 + $0x20] sm:$0xff]
    %v661 = vld [vmem:[%s6 + $0x28] sm:$0xff]
    %v662 = vld [vmem:[%s6 + $0x30] sm:$0xff]
    %v663 = vld [vmem:[%s6 + $0x38] sm:$0xff]
    %v664 = vld [vmem:[%s7] sm:$0xff]
    %v665 = vld [vmem:[%s7 + $0x8] sm:$0xff]
    %v666 = vld [vmem:[%s7 + $0x10] sm:$0xff]
    %v667 = vld [vmem:[%s7 + $0x18] sm:$0xff]
    %v668 = vld [vmem:[%s7 + $0x20] sm:$0xff]
    %v669 = vld [vmem:[%s7 + $0x28] sm:$0xff]
    %v670 = vld [vmem:[%s7 + $0x30] sm:$0xff]
    %v671 = vld [vmem:[%s7 + $0x38] sm:$0xff]
    %673 = vset.pattern.permute.xlu0 0
    %674 = vperm.xlu0 %673, %v664
    %v675 = vpop.permute.xlu0 %674
    %678 = vset.pattern.permute.xlu0 0
    %679 = vperm.xlu0 %678, %v665
    %v680 = vpop.permute.xlu0 %679
    %683 = vset.pattern.permute.xlu0 0
    %684 = vperm.xlu0 %683, %v666
    %v685 = vpop.permute.xlu0 %684
    %688 = vset.pattern.permute.xlu0 0
    %689 = vperm.xlu0 %688, %v667
    %v690 = vpop.permute.xlu0 %689
    %693 = vset.pattern.permute.xlu0 0
    %694 = vperm.xlu0 %693, %v668
    %v695 = vpop.permute.xlu0 %694
    %698 = vset.pattern.permute.xlu0 0
    %699 = vperm.xlu0 %698, %v669
    %v700 = vpop.permute.xlu0 %699
    %703 = vset.pattern.permute.xlu0 0
    %704 = vperm.xlu0 %703, %v670
    %v705 = vpop.permute.xlu0 %704
    %708 = vset.pattern.permute.xlu0 0
    %709 = vperm.xlu0 %708, %v671
    %v710 = vpop.permute.xlu0 %709
    %v713 = vsel %vm422, %v656, 0
    %v716 = vsel %vm422, %v657, 0
    %v719 = vsel %vm422, %v658, 0
    %v722 = vsel %vm422, %v659, 0
    %v725 = vsel %vm422, %v660, 0
    %v728 = vsel %vm422, %v661, 0
    %v731 = vsel %vm422, %v662, 0
    %v734 = vsel %vm422, %v663, 0
    %736 = vmatprep.subr.mxu0 0.0
    %737 = vmatpush1.msra.mxu0 %v648
    %738 = vmatprep.subr.mxu0 0.0
    %739 = vmatpush1.msra.mxu0 %v649
    %740 = vmatprep.subr.mxu0 0.0
    %741 = vmatpush1.msra.mxu0 %v650
    %742 = vmatprep.subr.mxu0 0.0
    %743 = vmatpush1.msra.mxu0 %v651
    %744 = vmatprep.subr.mxu0 0.0
    %745 = vmatpush1.msra.mxu0 %v652
    %746 = vmatprep.subr.mxu0 0.0
    %747 = vmatpush1.msra.mxu0 %v653
    %748 = vmatprep.subr.mxu0 0.0
    %749 = vmatpush1.msra.mxu0 %v654
    %750 = vmatprep.subr.mxu0 0.0
    %751 = vmatpush1.msra.mxu0 %v655
    %752 = vmatprep.subr.mxu0 0.0
    %753 = vmatpush1.msra.mxu0 0.0
    %754 = vmatprep.subr.mxu0 0.0
    %755 = vmatpush1.msra.mxu0 0.0
    %756 = vmatprep.subr.mxu0 0.0
    %757 = vmatpush1.msra.mxu0 0.0
    %758 = vmatprep.subr.mxu0 0.0
    %759 = vmatpush1.msra.mxu0 0.0
    %760 = vmatprep.subr.mxu0 0.0
    %761 = vmatpush1.msra.mxu0 0.0
    %762 = vmatprep.subr.mxu0 0.0
    %763 = vmatpush1.msra.mxu0 0.0
    %764 = vmatprep.subr.mxu0 0.0
    %765 = vmatpush1.msra.mxu0 0.0
    %766 = vmatprep.subr.mxu0 0.0
    %767 = vmatpush1.msra.mxu0 0.0
    %768 = vmatprep.subr.mxu0 0.0
    %769 = vmatpush1.msra.mxu0 0.0
    %770 = vmatprep.subr.mxu0 0.0
    %771 = vmatpush1.msra.mxu0 0.0
    %772 = vmatprep.subr.mxu0 0.0
    %773 = vmatpush1.msra.mxu0 0.0
    %774 = vmatprep.subr.mxu0 0.0
    %775 = vmatpush1.msra.mxu0 0.0
    %776 = vmatprep.subr.mxu0 0.0
    %777 = vmatpush1.msra.mxu0 0.0
    %778 = vmatprep.subr.mxu0 0.0
    %779 = vmatpush1.msra.mxu0 0.0
    %780 = vmatprep.subr.mxu0 0.0
    %781 = vmatpush1.msra.mxu0 0.0
    %782 = vmatprep.subr.mxu0 0.0
    %783 = vmatpush1.msra.mxu0 0.0
    %784 = vmatprep.subr.mxu0 0.0
    %785 = vmatpush1.msra.mxu0 0.0
    %786 = vmatprep.subr.mxu0 0.0
    %787 = vmatpush1.msra.mxu0 0.0
    %788 = vmatprep.subr.mxu0 0.0
    %789 = vmatpush1.msra.mxu0 0.0
    %790 = vmatprep.subr.mxu0 0.0
    %791 = vmatpush1.msra.mxu0 0.0
    %792 = vmatprep.subr.mxu0 0.0
    %793 = vmatpush1.msra.mxu0 0.0
    %794 = vmatprep.subr.mxu0 0.0
    %795 = vmatpush1.msra.mxu0 0.0
    %796 = vmatprep.subr.mxu0 0.0
    %797 = vmatpush1.msra.mxu0 0.0
    %798 = vmatprep.subr.mxu0 0.0
    %799 = vmatpush1.msra.mxu0 0.0
    %800 = vmatprep.mubr.f32.mxu0 0.0
    %801 = vmatmul.mubr.f32.gmra.mrb[0].mxu0 %v713
    %v802 = vpop.f32.mrb[0].mxu0
    %v803 = vadd.f32 %v675, %v802
    %v804 = vpop.f32.mrb[0].mxu0
    %805 = vmatprep.mubr.f32.mxu0 0.0
    %806 = vmatmul.mubr.f32.gmra.mrb[0].mxu0 %v716
    %v807 = vpop.f32.mrb[0].mxu0
    %v808 = vadd.f32 %v680, %v807
    %v809 = vpop.f32.mrb[0].mxu0
    %810 = vmatprep.mubr.f32.mxu0 0.0
    %811 = vmatmul.mubr.f32.gmra.mrb[0].mxu0 %v719
    %v812 = vpop.f32.mrb[0].mxu0
    %v813 = vadd.f32 %v685, %v812
    %v814 = vpop.f32.mrb[0].mxu0
    %815 = vmatprep.mubr.f32.mxu0 0.0
    %816 = vmatmul.mubr.f32.gmra.mrb[0].mxu0 %v722
    %v817 = vpop.f32.mrb[0].mxu0
    %v818 = vadd.f32 %v690, %v817
    %v819 = vpop.f32.mrb[0].mxu0
    %820 = vmatprep.mubr.f32.mxu0 0.0
    %821 = vmatmul.mubr.f32.gmra.mrb[0].mxu0 %v725
    %v822 = vpop.f32.mrb[0].mxu0
    %v823 = vadd.f32 %v695, %v822
    %v824 = vpop.f32.mrb[0].mxu0
    %825 = vmatprep.mubr.f32.mxu0 0.0
    %826 = vmatmul.mubr.f32.gmra.mrb[0].mxu0 %v728
    %v827 = vpop.f32.mrb[0].mxu0
    %v828 = vadd.f32 %v700, %v827
    %v829 = vpop.f32.mrb[0].mxu0
    %830 = vmatprep.mubr.f32.mxu0 0.0
    %831 = vmatmul.mubr.f32.gmra.mrb[0].mxu0 %v731
    %v832 = vpop.f32.mrb[0].mxu0
    %v833 = vadd.f32 %v705, %v832
    %v834 = vpop.f32.mrb[0].mxu0
    %835 = vmatprep.mubr.f32.mxu0 0.0
    %836 = vmatmul.mubr.f32.gmra.mrb[0].mxu0 %v734
    %v837 = vpop.f32.mrb[0].mxu0
    %v838 = vadd.f32 %v710, %v837
    %v839 = vpop.f32.mrb[0].mxu0
    %840 = vdwg.mxu0
    %vm841 = vcmp.gt.f32.partialorder %v803, 20.0
    %vm842 = vcmp.gt.f32.partialorder %v808, 20.0
    %vm843 = vcmp.gt.f32.partialorder %v813, 20.0
    %vm844 = vcmp.gt.f32.partialorder %v818, 20.0
    %vm845 = vcmp.gt.f32.partialorder %v823, 20.0
    %vm846 = vcmp.gt.f32.partialorder %v828, 20.0
    %vm847 = vcmp.gt.f32.partialorder %v833, 20.0
    %vm848 = vcmp.gt.f32.partialorder %v838, 20.0
    %v849 = vmul.f32 %v803, 1.442695
    %v850 = vpow.pop %v849
    %v851 = vmul.f32 %v808, 1.442695
    %v852 = vpow.pop %v851
    %v853 = vmul.f32 %v813, 1.442695
    %v854 = vpow.pop %v853
    %v855 = vmul.f32 %v818, 1.442695
    %v856 = vpow.pop %v855
    %v857 = vmul.f32 %v823, 1.442695
    %v858 = vpow.pop %v857
    %v859 = vmul.f32 %v828, 1.442695
    %v860 = vpow.pop %v859
    %v861 = vmul.f32 %v833, 1.442695
    %v862 = vpow.pop %v861
    %v863 = vmul.f32 %v838, 1.442695
    %v864 = vpow.pop %v863
    %v865 = vadd.f32 %v850, 1.0
    %v866 = vlog2.pop %v865
    %v867 = vmul.f32 %v866, 0.6931472
    %v868 = vmul.f32 -0.5, %v850
    %v869 = vadd.f32 %v868, 1.0
    %v870 = vmul.f32 %v869, %v850
    %v871 = vand.u32 2147483647, %v850
    %vm872 = vcmp.lt.f32.partialorder %v871, 0.0004427343
    %v873 = vsel %vm872, %v870, %v867
    %v874 = vadd.f32 %v852, 1.0
    %v875 = vlog2.pop %v874
    %v876 = vmul.f32 %v875, 0.6931472
    %v877 = vmul.f32 -0.5, %v852
    %v878 = vadd.f32 %v877, 1.0
    %v879 = vmul.f32 %v878, %v852
    %v880 = vand.u32 2147483647, %v852
    %vm881 = vcmp.lt.f32.partialorder %v880, 0.0004427343
    %v882 = vsel %vm881, %v879, %v876
    %v883 = vadd.f32 %v854, 1.0
    %v884 = vlog2.pop %v883
    %v885 = vmul.f32 %v884, 0.6931472
    %v886 = vmul.f32 -0.5, %v854
    %v887 = vadd.f32 %v886, 1.0
    %v888 = vmul.f32 %v887, %v854
    %v889 = vand.u32 2147483647, %v854
    %vm890 = vcmp.lt.f32.partialorder %v889, 0.0004427343
    %v891 = vsel %vm890, %v888, %v885
    %v892 = vadd.f32 %v856, 1.0
    %v893 = vlog2.pop %v892
    %v894 = vmul.f32 %v893, 0.6931472
    %v895 = vmul.f32 -0.5, %v856
    %v896 = vadd.f32 %v895, 1.0
    %v897 = vmul.f32 %v896, %v856
    %v898 = vand.u32 2147483647, %v856
    %vm899 = vcmp.lt.f32.partialorder %v898, 0.0004427343
    %v900 = vsel %vm899, %v897, %v894
    %v901 = vadd.f32 %v858, 1.0
    %v902 = vlog2.pop %v901
    %v903 = vmul.f32 %v902, 0.6931472
    %v904 = vmul.f32 -0.5, %v858
    %v905 = vadd.f32 %v904, 1.0
    %v906 = vmul.f32 %v905, %v858
    %v907 = vand.u32 2147483647, %v858
    %vm908 = vcmp.lt.f32.partialorder %v907, 0.0004427343
    %v909 = vsel %vm908, %v906, %v903
    %v910 = vadd.f32 %v860, 1.0
    %v911 = vlog2.pop %v910
    %v912 = vmul.f32 %v911, 0.6931472
    %v913 = vmul.f32 -0.5, %v860
    %v914 = vadd.f32 %v913, 1.0
    %v915 = vmul.f32 %v914, %v860
    %v916 = vand.u32 2147483647, %v860
    %vm917 = vcmp.lt.f32.partialorder %v916, 0.0004427343
    %v918 = vsel %vm917, %v915, %v912
    %v919 = vadd.f32 %v862, 1.0
    %v920 = vlog2.pop %v919
    %v921 = vmul.f32 %v920, 0.6931472
    %v922 = vmul.f32 -0.5, %v862
    %v923 = vadd.f32 %v922, 1.0
    %v924 = vmul.f32 %v923, %v862
    %v925 = vand.u32 2147483647, %v862
    %vm926 = vcmp.lt.f32.partialorder %v925, 0.0004427343
    %v927 = vsel %vm926, %v924, %v921
    %v928 = vadd.f32 %v864, 1.0
    %v929 = vlog2.pop %v928
    %v930 = vmul.f32 %v929, 0.6931472
    %v931 = vmul.f32 -0.5, %v864
    %v932 = vadd.f32 %v931, 1.0
    %v933 = vmul.f32 %v932, %v864
    %v934 = vand.u32 2147483647, %v864
    %vm935 = vcmp.lt.f32.partialorder %v934, 0.0004427343
    %v936 = vsel %vm935, %v933, %v930
    %v937 = vsel %vm841, %v803, %v873
    %v938 = vsel %vm842, %v808, %v882
    %v939 = vsel %vm843, %v813, %v891
    %v940 = vsel %vm844, %v818, %v900
    %v941 = vsel %vm845, %v823, %v909
    %v942 = vsel %vm846, %v828, %v918
    %v943 = vsel %vm847, %v833, %v927
    %v944 = vsel %vm848, %v838, %v936
    %v945 = vld [vmem:[%s8] sm:$0x1]
    %v946 = vld [vmem:[#allocation2] sm:$0x1]
    %948 = vset.pattern.permute.xlu0 0
    %949 = vperm.xlu0 %948, %v946
    %v950 = vpop.permute.xlu0 %949
    %v952 = vlaneseq
    %v953 = vshrl.u32 %v952, 7
    %v954 = vsub.s32 0, %v953
    %v955 = vrot.slane %v950, %v954
    %v957 = vsel %vm422, %v945, 0
    %959 = vmatprep.subr.mxu0 0.0
    %960 = vmatpush1.msra.mxu0 %v937
    %961 = vmatprep.subr.mxu0 0.0
    %962 = vmatpush1.msra.mxu0 %v938
    %963 = vmatprep.subr.mxu0 0.0
    %964 = vmatpush1.msra.mxu0 %v939
    %965 = vmatprep.subr.mxu0 0.0
    %966 = vmatpush1.msra.mxu0 %v940
    %967 = vmatprep.subr.mxu0 0.0
    %968 = vmatpush1.msra.mxu0 %v941
    %969 = vmatprep.subr.mxu0 0.0
    %970 = vmatpush1.msra.mxu0 %v942
    %971 = vmatprep.subr.mxu0 0.0
    %972 = vmatpush1.msra.mxu0 %v943
    %973 = vmatprep.subr.mxu0 0.0
    %974 = vmatpush1.msra.mxu0 %v944
    %975 = vmatprep.subr.mxu0 0.0
    %976 = vmatpush1.msra.mxu0 0.0
    %977 = vmatprep.subr.mxu0 0.0
    %978 = vmatpush1.msra.mxu0 0.0
    %979 = vmatprep.subr.mxu0 0.0
    %980 = vmatpush1.msra.mxu0 0.0
    %981 = vmatprep.subr.mxu0 0.0
    %982 = vmatpush1.msra.mxu0 0.0
    %983 = vmatprep.subr.mxu0 0.0
    %984 = vmatpush1.msra.mxu0 0.0
    %985 = vmatprep.subr.mxu0 0.0
    %986 = vmatpush1.msra.mxu0 0.0
    %987 = vmatprep.subr.mxu0 0.0
    %988 = vmatpush1.msra.mxu0 0.0
    %989 = vmatprep.subr.mxu0 0.0
    %990 = vmatpush1.msra.mxu0 0.0
    %991 = vmatprep.subr.mxu0 0.0
    %992 = vmatpush1.msra.mxu0 0.0
    %993 = vmatprep.subr.mxu0 0.0
    %994 = vmatpush1.msra.mxu0 0.0
    %995 = vmatprep.subr.mxu0 0.0
    %996 = vmatpush1.msra.mxu0 0.0
    %997 = vmatprep.subr.mxu0 0.0
    %998 = vmatpush1.msra.mxu0 0.0
    %999 = vmatprep.subr.mxu0 0.0
    %1000 = vmatpush1.msra.mxu0 0.0
    %1001 = vmatprep.subr.mxu0 0.0
    %1002 = vmatpush1.msra.mxu0 0.0
    %1003 = vmatprep.subr.mxu0 0.0
    %1004 = vmatpush1.msra.mxu0 0.0
    %1005 = vmatprep.subr.mxu0 0.0
    %1006 = vmatpush1.msra.mxu0 0.0
    %1007 = vmatprep.subr.mxu0 0.0
    %1008 = vmatpush1.msra.mxu0 0.0
    %1009 = vmatprep.subr.mxu0 0.0
    %1010 = vmatpush1.msra.mxu0 0.0
    %1011 = vmatprep.subr.mxu0 0.0
    %1012 = vmatpush1.msra.mxu0 0.0
    %1013 = vmatprep.subr.mxu0 0.0
    %1014 = vmatpush1.msra.mxu0 0.0
    %1015 = vmatprep.subr.mxu0 0.0
    %1016 = vmatpush1.msra.mxu0 0.0
    %1017 = vmatprep.subr.mxu0 0.0
    %1018 = vmatpush1.msra.mxu0 0.0
    %1019 = vmatprep.subr.mxu0 0.0
    %1020 = vmatpush1.msra.mxu0 0.0
    %1021 = vmatprep.subr.mxu0 0.0
    %1022 = vmatpush1.msra.mxu0 0.0
    %1023 = vmatprep.mubr.f32.mxu0 0.0
    %1024 = vmatmul.mubr.f32.gmra.mrb[0].mxu0 %v957
    %v1025 = vpop.f32.mrb[0].mxu0
    %v1026 = vadd.f32 %v955, %v1025
    %v1027 = vpop.f32.mrb[0].mxu0
    %1028 = vdwg.mxu0
    %1029 = vst [vmem:[#allocation3] sm:$0x1] %v1026
    // Predicated region
    $region42: #{tpu_custom_call.1} parent=1 // pred_check
      _
    $region43: #{tpu_custom_call.1} parent=1 // pred_check_branch
      %1031 = sbr.rel (0) target = $region45
    $region44: #{tpu_custom_call.1} parent=1 // pred_region
      %s1033 = ssub.s32 16, 16
      %1034 = vsyncadd [#allocation4], %s1033
      %s1036 = sshll.u32 [#allocation3], 4
      %s1037 = int_to_ptr.vmem [resolvable:$true] %s1036
      %1039 = dma.vmem_to_hbm [thread:$0]  %s1037, 16, %s10, [#allocation4]
    $region45: #{tpu_custom_call.1} parent=1 // pred_fallthru
      _
    // Predicated region
    $region46: #{tpu_custom_call.1} parent=1 // pred_check
      _
    $region47: #{tpu_custom_call.1} parent=1 // pred_check_branch
      %1041 = sbr.rel (0) target = $region49
    $region48: #{tpu_custom_call.1} parent=1 // pred_region
      %1042 = dma.done [#allocation4], 16
    $region49: #{tpu_custom_call.1} parent=1 // pred_fallthru
      _
    %1043 = vsyncpa [#allocation4], 1

</llo_original>
